<compile_context>
chip_gen: v7x
topology: tpu7x:2x2x1
jax: 0.10.0
libtpu: 0.0.40
codegen_flags: <defaults>
</compile_context>

<pallas_src>
import jax
import jax.numpy as jnp
from jax.experimental import pallas as pl
from jax.experimental.pallas import tpu as pltpu


def _round_up(x, m):
    return ((x + m - 1) // m) * m


def _pick_group_size(batch, n, target_rows=128):
    """Graphs per grid step: fill ~128 MXU rows, but keep >=2 grid steps."""
    g = max(1, (target_rows + n - 1) // n)
    g = min(g, max(batch, 1))
    while g > 1 and (batch + g - 1) // g < 2:   # don't starve v7x's 2nd core
        g //= 2
    return max(g, 1)


# -----------------------------------------------------------------------------
# Pallas kernel: full encoder forward for G graphs per grid step.
# -----------------------------------------------------------------------------
def _make_encoder_kernel(conv1_propagate_first: bool,
                         heads_propagate_first: bool,
                         out_dtype):
    """Block shapes seen by the kernel:
      a_ref  : [G, N, N]        normalized adjacencies (compute dtype)
      x_ref  : [G, N, Fin]      node features          (compute dtype)
      w1_ref : [Fin, Fmid_pad]  conv1 weight, lane-padded to 128
      b1_ref : [1, Fmid_pad]    conv1 bias (f32)
      wh_ref : [Fmid_pad, Fpad] fused [mu | logstd] weight, zero-padded
      bh_ref : [1, Fpad]        fused [mu | logstd] bias (f32)
      o_ref  : [G, N, Fpad]     fused [mu | logstd] output (out_dtype)
    """

    def kernel(a_ref, x_ref, w1_ref, b1_ref, wh_ref, bh_ref, o_ref):
        a = a_ref[...]                       # [G, N, N]
        x = x_ref[...]                       # [G, N, Fin]
        g, n, fin = x.shape
        fmid = w1_ref.shape[1]
        fpad = wh_ref.shape[1]
        cdt = a.dtype

        # --- conv1: A_hat @ X @ W1 + b1, then ReLU ---------------------------
        if conv1_propagate_first:            # Fin <= Fmid_pad: N^2 term ~ Fin
            ax = jnp.einsum('gij,gjf->gif', a, x,
                            preferred_element_type=jnp.float32)      # [G,N,Fin]
            h = jnp.dot(ax.astype(cdt).reshape(g * n, fin), w1_ref[...],
                        preferred_element_type=jnp.float32)          # [G*N,Fmid]
        else:                                # transform first, then propagate
            xw = jnp.dot(x.reshape(g * n, fin), w1_ref[...],
                         preferred_element_type=jnp.float32)
            h = jnp.einsum('gij,gjf->gif', a,
                           xw.astype(cdt).reshape(g, n, fmid),
                           preferred_element_type=jnp.float32
                           ).reshape(g * n, fmid)
        h = jnp.maximum(h + b1_ref[...], 0.0).astype(cdt)            # [G*N,Fmid]

        # --- shared propagation + fused mu/logstd heads ----------------------
        if heads_propagate_first:            # Fmid_pad <= Fpad
            ah = jnp.einsum('gij,gjf->gif', a, h.reshape(g, n, fmid),
                            preferred_element_type=jnp.float32)      # [G,N,Fmid]
            heads = jnp.dot(ah.astype(cdt).reshape(g * n, fmid), wh_ref[...],
                            preferred_element_type=jnp.float32)      # [G*N,Fpad]
        else:                                # wide hidden: transform first
            hw = jnp.dot(h, wh_ref[...], preferred_element_type=jnp.float32)
            heads = jnp.einsum('gij,gjf->gif', a,
                               hw.astype(cdt).reshape(g, n, fpad),
                               preferred_element_type=jnp.float32
                               ).reshape(g * n, fpad)
        # bf16 lane-dense writeback (accumulation stayed f32 above).
        o_ref[...] = (heads + bh_ref[...]).astype(out_dtype).reshape(g, n, fpad)

    return kernel


# -----------------------------------------------------------------------------
# One-time parameter preparation (hoisted out of the forward path).
# -----------------------------------------------------------------------------
def prepare_encoder_params(params, *, compute_dtype=jnp.bfloat16):
    fin, fmid = params["w1"].shape
    fout = params["wmu"].shape[1]
    two_fout = 2 * fout
    fmid_pad = _round_up(max(fmid, 128), 128)     # lane-dense hidden
    fpad = _round_up(max(two_fout, 128), 128)     # lane-dense fused head output

    w1 = jnp.pad(params["w1"], ((0, 0), (0, fmid_pad - fmid)))
    b1 = jnp.pad(params["b1"], (0, fmid_pad - fmid)).reshape(1, fmid_pad)

    wh = jnp.concatenate([params["wmu"], params["wls"]], axis=1)
    wh = jnp.pad(wh, ((0, fmid_pad - fmid), (0, fpad - two_fout)))
    bh = jnp.concatenate([params["bmu"], params["bls"]], axis=0)
    bh = jnp.pad(bh, (0, fpad - two_fout)).reshape(1, fpad)

    return {
        "w1": w1.astype(compute_dtype),
        "b1": b1.astype(jnp.float32),
        "wh": wh.astype(compute_dtype),
        "bh": bh.astype(jnp.float32),
        "fin": fin, "fmid_pad": fmid_pad, "fout": fout, "fpad": fpad,
        "compute_dtype": compute_dtype,
        "conv1_propagate_first": fin <= fmid_pad,
        "heads_propagate_first": fmid_pad <= fpad,
    }


# -----------------------------------------------------------------------------
# Forward wrappers
# -----------------------------------------------------------------------------
def cmap_encoder2_pallas_batched(a_hat, x, prep, *, group_size=None):
    """a_hat: [B, N, N], x: [B, N, Fin].  Returns (mu, logstd), each [B, N, Fout] f32."""
    bsz, n, _ = a_hat.shape
    fin, fmid_pad = prep["fin"], prep["fmid_pad"]
    fout, fpad = prep["fout"], prep["fpad"]
    cdt = prep["compute_dtype"]
    out_dtype = cdt                              # halve output HBM writeback

    g = group_size if group_size is not None else _pick_group_size(bsz, n)
    bpad = _round_up(bsz, g)

    a_hat = a_hat if a_hat.dtype == cdt else a_hat.astype(cdt)
    x = x if x.dtype == cdt else x.astype(cdt)
    if bpad != bsz:                              # pad batch to a multiple of G
        a_hat = jnp.pad(a_hat, ((0, bpad - bsz), (0, 0), (0, 0)))
        x = jnp.pad(x, ((0, bpad - bsz), (0, 0), (0, 0)))

    kernel = _make_encoder_kernel(prep["conv1_propagate_first"],
                                  prep["heads_propagate_first"],
                                  out_dtype)

    out = pl.pallas_call(
        kernel,
        out_shape=jax.ShapeDtypeStruct((bpad, n, fpad), out_dtype),
        grid=(bpad // g,),
        in_specs=[
            pl.BlockSpec((g, n, n), lambda i: (i, 0, 0)),       # A_hat group
            pl.BlockSpec((g, n, fin), lambda i: (i, 0, 0)),     # X group
            pl.BlockSpec((fin, fmid_pad), lambda i: (0, 0)),    # W1 (shared)
            pl.BlockSpec((1, fmid_pad), lambda i: (0, 0)),      # b1 (shared)
            pl.BlockSpec((fmid_pad, fpad), lambda i: (0, 0)),   # W_heads (shared)
            pl.BlockSpec((1, fpad), lambda i: (0, 0)),          # b_heads (shared)
        ],
        out_specs=pl.BlockSpec((g, n, fpad), lambda i: (i, 0, 0)),
        compiler_params=pltpu.CompilerParams(
            dimension_semantics=("parallel",)),                 # megacore on v7x
    )(a_hat, x, prep["w1"], prep["b1"], prep["wh"], prep["bh"])

    mu = out[:bsz, :, :fout].astype(jnp.float32)
    logstd = out[:bsz, :, fout:2 * fout].astype(jnp.float32)
    return mu, logstd


def cmap_encoder2_pallas(a_hat, x, prep):
    """Single-graph forward (matches the PyTorch module's forward signature)."""
    mu, logstd = cmap_encoder2_pallas_batched(a_hat[None], x[None], prep)
    return mu[0], logstd[0]


# -----------------------------------------------------------------------------
# Glue: edge_index -> dense symmetric-normalized adjacency
# (adds self loops, D^{-1/2}(A+I)D^{-1/2}).  NOTE: duplicate edges collapse to
# 1 and explicit self-loops get an extra +1 from eye(); fine for simple graphs.
# -----------------------------------------------------------------------------
def normalized_adjacency(edge_index, num_nodes, dtype=jnp.float32):
    src, dst = edge_index[0], edge_index[1]
    a = jnp.zeros((num_nodes, num_nodes), jnp.float32)
    a = a.at[dst, src].set(1.0)                       # aggregate source -> dest
    a = a + jnp.eye(num_nodes, dtype=jnp.float32)     # self loops
    deg = jnp.sum(a, axis=1)
    dinv_sqrt = jnp.where(deg > 0, 1.0 / jnp.sqrt(deg), 0.0)
    return (dinv_sqrt[:, None] * a * dinv_sqrt[None, :]).astype(dtype)


# -----------------------------------------------------------------------------
# Deterministic parameter init (GCNConv(in,mid), GCNConv(mid,out) x2)
# -----------------------------------------------------------------------------
def init_params(key, in_size, mid_size, out_size):
    k1, k2, k3 = jax.random.split(key, 3)

    def glorot(k, fan_in, fan_out):
        lim = jnp.sqrt(6.0 / (fan_in + fan_out))
        return jax.random.uniform(k, (fan_in, fan_out), jnp.float32, -lim, lim)

    return {
        "w1": glorot(k1, in_size, mid_size),
        "b1": jnp.zeros((mid_size,), jnp.float32),
        "wmu": glorot(k2, mid_size, out_size),
        "bmu": jnp.zeros((out_size,), jnp.float32),
        "wls": glorot(k3, mid_size, out_size),
        "bls": jnp.zeros((out_size,), jnp.float32),
    }


# -----------------------------------------------------------------------------
# Pure-JAX f32 reference
# -----------------------------------------------------------------------------
def reference_forward(a_hat, x, p):
    h = jnp.maximum(a_hat @ x @ p["w1"] + p["b1"], 0.0)
    mu = a_hat @ h @ p["wmu"] + p["bmu"]
    ls = a_hat @ h @ p["wls"] + p["bls"]
    return mu, ls


def make_ring_graph(num_nodes, chord_offset):
    """Deterministic undirected ring graph with a few chords."""
    idx = jnp.arange(num_nodes, dtype=jnp.int32)
    src = jnp.concatenate([idx, idx[:4]])
    dst = jnp.concatenate([(idx + 1) % num_nodes,
                           (idx[:4] + chord_offset) % num_nodes])
    return jnp.stack([jnp.concatenate([src, dst]),
                      jnp.concatenate([dst, src])], axis=0)


if __name__ == "__main__":
    key = jax.random.PRNGKey(0)

    # Small shapes consistent with the module.
    batch, num_nodes, in_size, mid_size, out_size = 4, 16, 8, 32, 16

    k_x, k_p = jax.random.split(key, 2)
    x_b = jax.random.normal(k_x, (batch, num_nodes, in_size), jnp.float32)

    # f32 A_hat for the reference; bf16 copy cached ONCE for the kernel
    # (avoids a per-call astype materialization).
    a_hat_b = jnp.stack([
        normalized_adjacency(make_ring_graph(num_nodes, 3 + b), num_nodes)
        for b in range(batch)
    ], axis=0)
    a_hat_bf16 = a_hat_b.astype(jnp.bfloat16)

    params = init_params(k_p, in_size, mid_size, out_size)
    prep = prepare_encoder_params(params)       # one-time weight fusion/pad/cast

    # Batched forward: one pallas_call, G graphs per grid step.
    mu_b, logstd_b = cmap_encoder2_pallas_batched(a_hat_bf16, x_b, prep)
    jax.block_until_ready((mu_b, logstd_b))
    assert mu_b.shape == (batch, num_nodes, out_size)
    assert logstd_b.shape == (batch, num_nodes, out_size)

    # bf16 matmul inputs / bf16 writeback with f32 accumulation -> loose tol.
    for b in range(batch):
        mu_ref, ls_ref = reference_forward(a_hat_b[b], x_b[b], params)
        assert jnp.allclose(mu_b[b], mu_ref, atol=6e-2, rtol=6e-2), "mu mismatch"
        assert jnp.allclose(logstd_b[b], ls_ref, atol=6e-2, rtol=6e-2), "logstd mismatch"

    # Single-graph wrapper (matches the module's forward signature).
    mu0, ls0 = cmap_encoder2_pallas(a_hat_bf16[0], x_b[0], prep)
    jax.block_until_ready((mu0, ls0))
    mu_ref0, ls_ref0 = reference_forward(a_hat_b[0], x_b[0], params)
    assert mu0.shape == (num_nodes, out_size) and ls0.shape == (num_nodes, out_size)
    assert jnp.allclose(mu0, mu_ref0, atol=6e-2, rtol=6e-2), "single-graph mu mismatch"
    assert jnp.allclose(ls0, ls_ref0, atol=6e-2, rtol=6e-2), "single-graph logstd mismatch"

    print("KERNEL_OK")
</pallas_src>

<mosaic_0001>
module attributes {stable_mosaic.version = 11 : i64} {
  func.func @kernel(%arg0: i32, %arg1: memref<2x16x16xbf16, #tpu.memory_space<vmem>>, %arg2: memref<2x16x8xbf16, #tpu.memory_space<vmem>>, %arg3: memref<8x128xbf16, #tpu.memory_space<vmem>>, %arg4: memref<1x128xf32, #tpu.memory_space<vmem>>, %arg5: memref<128x128xbf16, #tpu.memory_space<vmem>>, %arg6: memref<1x128xf32, #tpu.memory_space<vmem>>, %arg7: memref<2x16x128xbf16, #tpu.memory_space<vmem>>) attributes {dimension_semantics = [#tpu.dimension_semantics<parallel>], iteration_bounds = array<i64: 2>, scalar_prefetch = 0 : i64, scratch_operands = 0 : i64, tpu.core_type = #tpu.core_type<tc>, window_params = [{transform_indices = @transform_0, window_bounds = array<i64: 2, 16, 16>}, {transform_indices = @transform_1, window_bounds = array<i64: 2, 16, 8>}, {pipeline_mode = #tpu.pipeline_mode<synchronous>, transform_indices = @transform_2, window_bounds = array<i64: 8, 128>}, {pipeline_mode = #tpu.pipeline_mode<synchronous>, transform_indices = @transform_3, window_bounds = array<i64: 1, 128>}, {pipeline_mode = #tpu.pipeline_mode<synchronous>, transform_indices = @transform_4, window_bounds = array<i64: 128, 128>}, {pipeline_mode = #tpu.pipeline_mode<synchronous>, transform_indices = @transform_5, window_bounds = array<i64: 1, 128>}, {transform_indices = @transform_6, window_bounds = array<i64: 2, 16, 128>}]} {
    %c0 = arith.constant 0 : index
    %c0_0 = arith.constant 0 : index
    %c0_1 = arith.constant 0 : index
    %0 = vector.load %arg1[%c0, %c0_0, %c0_1] : memref<2x16x16xbf16, #tpu.memory_space<vmem>>, vector<2x16x16xbf16>
    %c0_2 = arith.constant 0 : index
    %c0_3 = arith.constant 0 : index
    %c0_4 = arith.constant 0 : index
    %1 = vector.load %arg2[%c0_2, %c0_3, %c0_4] : memref<2x16x8xbf16, #tpu.memory_space<vmem>>, vector<2x16x8xbf16>
    "tpu.trace_start"() <{level = 10 : i32, message = "gij,gjf->gif"}> : () -> ()
    %cst = arith.constant dense<0.000000e+00> : vector<2x16x8xf32>
    %2 = tpu.matmul %0, %1, %cst {dimension_numbers = #tpu.dot_dimension_numbers<[2], [1], [1], [2], [0, 0, 0, 1, 1, 2], [0], [0]>} : vector<2x16x16xbf16>, vector<2x16x8xbf16>, vector<2x16x8xf32> -> vector<2x16x8xf32>
    "tpu.trace_stop"() : () -> ()
    %3 = arith.truncf %2 : vector<2x16x8xf32> to vector<2x16x8xbf16>
    %4 = vector.shape_cast %3 : vector<2x16x8xbf16> to vector<32x8xbf16>
    %c0_5 = arith.constant 0 : index
    %c0_6 = arith.constant 0 : index
    %5 = vector.load %arg3[%c0_5, %c0_6] : memref<8x128xbf16, #tpu.memory_space<vmem>>, vector<8x128xbf16>
    %cst_7 = arith.constant dense<0.000000e+00> : vector<32x128xf32>
    %6 = tpu.matmul %4, %5, %cst_7 {dimension_numbers = #tpu.dot_dimension_numbers<[1], [0], [0], [1], [0, 0, 1, 1], [], []>} : vector<32x8xbf16>, vector<8x128xbf16>, vector<32x128xf32> -> vector<32x128xf32>
    %c0_8 = arith.constant 0 : index
    %c0_9 = arith.constant 0 : index
    %7 = vector.load %arg4[%c0_8, %c0_9] : memref<1x128xf32, #tpu.memory_space<vmem>>, vector<1x128xf32>
    %8 = vector.broadcast %7 : vector<1x128xf32> to vector<32x128xf32>
    %9 = arith.addf %6, %8 : vector<32x128xf32>
    %cst_10 = arith.constant 0.000000e+00 : f32
    %10 = vector.broadcast %cst_10 : f32 to vector<32x128xf32>
    %11 = arith.maximumf %9, %10 : vector<32x128xf32>
    %12 = arith.truncf %11 : vector<32x128xf32> to vector<32x128xbf16>
    %13 = vector.shape_cast %12 : vector<32x128xbf16> to vector<2x16x128xbf16>
    "tpu.trace_start"() <{level = 10 : i32, message = "gij,gjf->gif"}> : () -> ()
    %cst_11 = arith.constant dense<0.000000e+00> : vector<2x16x128xf32>
    %14 = tpu.matmul %0, %13, %cst_11 {dimension_numbers = #tpu.dot_dimension_numbers<[2], [1], [1], [2], [0, 0, 0, 1, 1, 2], [0], [0]>} : vector<2x16x16xbf16>, vector<2x16x128xbf16>, vector<2x16x128xf32> -> vector<2x16x128xf32>
    "tpu.trace_stop"() : () -> ()
    %15 = arith.truncf %14 : vector<2x16x128xf32> to vector<2x16x128xbf16>
    %16 = vector.shape_cast %15 : vector<2x16x128xbf16> to vector<32x128xbf16>
    %c0_12 = arith.constant 0 : index
    %c0_13 = arith.constant 0 : index
    %17 = vector.load %arg5[%c0_12, %c0_13] : memref<128x128xbf16, #tpu.memory_space<vmem>>, vector<128x128xbf16>
    %cst_14 = arith.constant dense<0.000000e+00> : vector<32x128xf32>
    %18 = tpu.matmul %16, %17, %cst_14 {dimension_numbers = #tpu.dot_dimension_numbers<[1], [0], [0], [1], [0, 0, 1, 1], [], []>} : vector<32x128xbf16>, vector<128x128xbf16>, vector<32x128xf32> -> vector<32x128xf32>
    %c0_15 = arith.constant 0 : index
    %c0_16 = arith.constant 0 : index
    %19 = vector.load %arg6[%c0_15, %c0_16] : memref<1x128xf32, #tpu.memory_space<vmem>>, vector<1x128xf32>
    %20 = vector.broadcast %19 : vector<1x128xf32> to vector<32x128xf32>
    %21 = arith.addf %18, %20 : vector<32x128xf32>
    %22 = arith.truncf %21 : vector<32x128xf32> to vector<32x128xbf16>
    %23 = vector.shape_cast %22 : vector<32x128xbf16> to vector<2x16x128xbf16>
    %c0_17 = arith.constant 0 : index
    %c0_18 = arith.constant 0 : index
    %c0_19 = arith.constant 0 : index
    %24 = vector.load %arg7[%c0_17, %c0_18, %c0_19] : memref<2x16x128xbf16, #tpu.memory_space<vmem>>, vector<2x16x128xbf16>
    tpu.vector_store %arg7[%c0_17, %c0_18, %c0_19], %23 {strides = array<i32>} : memref<2x16x128xbf16, #tpu.memory_space<vmem>>, vector<2x16x128xbf16>,
    return
  }
  func.func @transform_0(%arg0: i32) -> (i32, i32, i32) {
    %c0_i32 = arith.constant 0 : i32
    %c0_i32_0 = arith.constant 0 : i32
    %c0_i32_1 = arith.constant 0 : i32
    return %arg0, %c0_i32, %c0_i32_0 : i32, i32, i32
  }
  func.func @transform_1(%arg0: i32) -> (i32, i32, i32) {
    %c0_i32 = arith.constant 0 : i32
    %c0_i32_0 = arith.constant 0 : i32
    %c0_i32_1 = arith.constant 0 : i32
    return %arg0, %c0_i32, %c0_i32_0 : i32, i32, i32
  }
  func.func @transform_2(%arg0: i32) -> (i32, i32) {
    %c0_i32 = arith.constant 0 : i32
    %c0_i32_0 = arith.constant 0 : i32
    %c0_i32_1 = arith.constant 0 : i32
    return %c0_i32, %c0_i32_0 : i32, i32
  }
  func.func @transform_3(%arg0: i32) -> (i32, i32) {
    %c0_i32 = arith.constant 0 : i32
    %c0_i32_0 = arith.constant 0 : i32
    %c0_i32_1 = arith.constant 0 : i32
    return %c0_i32, %c0_i32_0 : i32, i32
  }
  func.func @transform_4(%arg0: i32) -> (i32, i32) {
    %c0_i32 = arith.constant 0 : i32
    %c0_i32_0 = arith.constant 0 : i32
    %c0_i32_1 = arith.constant 0 : i32
    return %c0_i32, %c0_i32_0 : i32, i32
  }
  func.func @transform_5(%arg0: i32) -> (i32, i32) {
    %c0_i32 = arith.constant 0 : i32
    %c0_i32_0 = arith.constant 0 : i32
    %c0_i32_1 = arith.constant 0 : i32
    return %c0_i32, %c0_i32_0 : i32, i32
  }
  func.func @transform_6(%arg0: i32) -> (i32, i32, i32) {
    %c0_i32 = arith.constant 0 : i32
    %c0_i32_0 = arith.constant 0 : i32
    %c0_i32_1 = arith.constant 0 : i32
    return %arg0, %c0_i32, %c0_i32_0 : i32, i32, i32
  }
}

</mosaic_0001>

<llo_original>
// kernel: tpu_custom_call.1
$region0: #{tpu_custom_call.1}
  #allocation0 [shape = 'u32[]', space=smem, size = 0x4, offset = 0x4, fixed_abs, tag = 'smem constant byte address 0x4 - core index']
  #allocation1 [shape = 'u32[144,128]{1,0:T(1,128)}', space=vmem, size = 0x12000, scoped, tag = 'internal scratch']
  %s0 = inlined_call_operand.vmem [shape: bf16[4,16,16], index: 0, kind: input, shape index: {}]
  %s1 = inlined_call_operand.vmem [shape: bf16[4,16,8], index: 1, kind: input, shape index: {}]
  %s2 = inlined_call_operand.vmem [shape: bf16[8,128], index: 2, kind: input, shape index: {}]
  %s3 = inlined_call_operand.vmem [shape: f32[1,128], index: 3, kind: input, shape index: {}]
  %s4 = inlined_call_operand.hbm [shape: bf16[128,128], index: 4, kind: input, shape index: {}]
  %s5 = inlined_call_operand.vmem [shape: f32[1,128], index: 5, kind: input, shape index: {}]
  %s6 = inlined_call_operand.hbm [shape: bf16[4,16,128], index: 6, kind: output, shape index: {}]
  %s7 = sld [smem:[#allocation0]]
  $region61: #{tpu_custom_call.1} parent=0
    _
  %s9 = ssub.s32 1, %s7
  %s10 = scalar_select 0, %s9, %s7
  $region1: #{tpu_custom_call.1} parent=0
    #allocation2 [shape = 'u8[32768]{0}', space=vmem, size = 0x8000, scoped, tag = 'input window, operand 4, single buffered']
    #allocation3 [shape = 's32[2]{0}', space=sflag, size = 0x8, scoped, tag = 'scoped memory for tpu_custom_call.1']
    #allocation4 [shape = 's32[2]{0}', space=sflag, size = 0x8, scoped, tag = 'scoped memory for tpu_custom_call.1']
    #allocation5 [shape = 'u8[16384]{0}', space=vmem, size = 0x4000, scoped, tag = 'output window, operand 0']
    %11 = vsyncpa [#allocation3], 0
    %12 = vsyncpa [#allocation4], 0
    %s13 = scalar_lea.sflag [#allocation4], 1
    %14 = vsyncpa %s13, 0
    loop: start=0, step=1, limit=4
    $region2: #{tpu_custom_call.1} parent=1 // loop_pre_header
      _
    $region3: #{tpu_custom_call.1} parent=1 // loop_header
      %s16 = sphi 0, %s20
      %p17 = scmp.ge.s32.totalorder %s16, 4
      %s26 = sphi 0, %s28
      %s29 = sphi 0, %s26
      %s30 = sphi 0, %s29
      %s46 = sphi 0, %s30
      %s52 = sphi 0, %s54
      %s55 = sphi 0, %s52
      %s56 = sphi 0, %s55
      %s72 = sphi 0, %s56
      %s76 = sphi 0, %s76
      %s78 = sphi 0, %s76
      %s79 = sphi 0, %s78
      %s93 = sphi 0, %s79
      %s97 = sphi 0, %s97
      %s99 = sphi 0, %s97
      %s100 = sphi 0, %s99
      %s114 = sphi 0, %s100
      %s118 = sphi 0, %s118
      %s120 = sphi 0, %s118
      %s121 = sphi 0, %s120
      %s135 = sphi 0, %s121
      %s139 = sphi 0, %s139
      %s141 = sphi 0, %s139
      %s142 = sphi 0, %s141
      %s156 = sphi 0, %s142
      %s162 = sphi 0, %s164
      %s165 = sphi 0, %s162
      %s166 = sphi 0, %s165
      %s182 = sphi 0, %s166
    $region4: #{tpu_custom_call.1} parent=1 // loop_header_branch
      %19 = sbr.rel (%p17) target = $region8
    $region5: #{tpu_custom_call.1} parent=1 // loop_body
      %s21 = ssub.s32 %s16, 1
      %s22 = ssub.s32 %s16, 2
      %s23 = sadd.s32 %s16, 1
      %s24 = ssub.s32 %s16, %s23
      %p25 = scmp.eq.s32.totalorder %s24, 0
      %s27 = sadd.s32 %s26, 1
      %s28 = scalar_select %p25, %s26, %s27
      %p31 = pneg %p25
      %p32 = scmp.eq.s32.totalorder %s16, 1
      %p33 = por %p31, %p32
      %p34 = scmp.ne.s32.totalorder %s26, %s29
      %p35 = scmp.eq.s32.totalorder %s16, 0
      %p36 = por %p34, %p35
      %p37 = scmp.ne.s32.totalorder %s26, %s29
      %p38 = scmp.eq.s32.totalorder %s21, 1
      %p39 = por %p37, %p38
      %p40 = scmp.ne.s32.totalorder %s29, %s30
      %p41 = scmp.eq.s32.totalorder %s21, 0
      %p42 = por %p40, %p41
      %p43 = scmp.ne.s32.totalorder %s29, %s30
      %p44 = scmp.eq.s32.totalorder %s22, 1
      %p45 = por %p43, %p44
      %p47 = scmp.ne.s32.totalorder %s30, %s46
      %p48 = scmp.eq.s32.totalorder %s22, 0
      %p49 = por %p47, %p48
      %s50 = ssub.s32 %s16, %s23
      %p51 = scmp.eq.s32.totalorder %s50, 0
      %s53 = sadd.s32 %s52, 1
      %s54 = scalar_select %p51, %s52, %s53
      %p57 = pneg %p51
      %p58 = scmp.eq.s32.totalorder %s16, 1
      %p59 = por %p57, %p58
      %p60 = scmp.ne.s32.totalorder %s52, %s55
      %p61 = scmp.eq.s32.totalorder %s16, 0
      %p62 = por %p60, %p61
      %p63 = scmp.ne.s32.totalorder %s52, %s55
      %p64 = scmp.eq.s32.totalorder %s21, 1
      %p65 = por %p63, %p64
      %p66 = scmp.ne.s32.totalorder %s55, %s56
      %p67 = scmp.eq.s32.totalorder %s21, 0
      %p68 = por %p66, %p67
      %p69 = scmp.ne.s32.totalorder %s55, %s56
      %p70 = scmp.eq.s32.totalorder %s22, 1
      %p71 = por %p69, %p70
      %p73 = scmp.ne.s32.totalorder %s56, %s72
      %p74 = scmp.eq.s32.totalorder %s22, 0
      %p75 = por %p73, %p74
      %s77 = sadd.s32 %s76, 1
      %p80 = scmp.eq.s32.totalorder %s16, 1
      %p81 = scmp.ne.s32.totalorder %s76, %s78
      %p82 = scmp.eq.s32.totalorder %s16, 0
      %p83 = por %p81, %p82
      %p84 = scmp.ne.s32.totalorder %s76, %s78
      %p85 = scmp.eq.s32.totalorder %s21, 1
      %p86 = por %p84, %p85
      %p87 = scmp.ne.s32.totalorder %s78, %s79
      %p88 = scmp.eq.s32.totalorder %s21, 0
      %p89 = por %p87, %p88
      %p90 = scmp.ne.s32.totalorder %s78, %s79
      %p91 = scmp.eq.s32.totalorder %s22, 1
      %p92 = por %p90, %p91
      %p94 = scmp.ne.s32.totalorder %s79, %s93
      %p95 = scmp.eq.s32.totalorder %s22, 0
      %p96 = por %p94, %p95
      %s98 = sadd.s32 %s97, 1
      %p101 = scmp.eq.s32.totalorder %s16, 1
      %p102 = scmp.ne.s32.totalorder %s97, %s99
      %p103 = scmp.eq.s32.totalorder %s16, 0
      %p104 = por %p102, %p103
      %p105 = scmp.ne.s32.totalorder %s97, %s99
      %p106 = scmp.eq.s32.totalorder %s21, 1
      %p107 = por %p105, %p106
      %p108 = scmp.ne.s32.totalorder %s99, %s100
      %p109 = scmp.eq.s32.totalorder %s21, 0
      %p110 = por %p108, %p109
      %p111 = scmp.ne.s32.totalorder %s99, %s100
      %p112 = scmp.eq.s32.totalorder %s22, 1
      %p113 = por %p111, %p112
      %p115 = scmp.ne.s32.totalorder %s100, %s114
      %p116 = scmp.eq.s32.totalorder %s22, 0
      %p117 = por %p115, %p116
      %s119 = sadd.s32 %s118, 1
      %p122 = scmp.eq.s32.totalorder %s16, 1
      %p123 = scmp.ne.s32.totalorder %s118, %s120
      %p124 = scmp.eq.s32.totalorder %s16, 0
      %p125 = por %p123, %p124
      %p126 = scmp.ne.s32.totalorder %s118, %s120
      %p127 = scmp.eq.s32.totalorder %s21, 1
      %p128 = por %p126, %p127
      %p129 = scmp.ne.s32.totalorder %s120, %s121
      %p130 = scmp.eq.s32.totalorder %s21, 0
      %p131 = por %p129, %p130
      %p132 = scmp.ne.s32.totalorder %s120, %s121
      %p133 = scmp.eq.s32.totalorder %s22, 1
      %p134 = por %p132, %p133
      %p136 = scmp.ne.s32.totalorder %s121, %s135
      %p137 = scmp.eq.s32.totalorder %s22, 0
      %p138 = por %p136, %p137
      %s140 = sadd.s32 %s139, 1
      %p143 = scmp.eq.s32.totalorder %s16, 1
      %p144 = scmp.ne.s32.totalorder %s139, %s141
      %p145 = scmp.eq.s32.totalorder %s16, 0
      %p146 = por %p144, %p145
      %p147 = scmp.ne.s32.totalorder %s139, %s141
      %p148 = scmp.eq.s32.totalorder %s21, 1
      %p149 = por %p147, %p148
      %p150 = scmp.ne.s32.totalorder %s141, %s142
      %p151 = scmp.eq.s32.totalorder %s21, 0
      %p152 = por %p150, %p151
      %p153 = scmp.ne.s32.totalorder %s141, %s142
      %p154 = scmp.eq.s32.totalorder %s22, 1
      %p155 = por %p153, %p154
      %p157 = scmp.ne.s32.totalorder %s142, %s156
      %p158 = scmp.eq.s32.totalorder %s22, 0
      %p159 = por %p157, %p158
      %s160 = ssub.s32 %s16, %s23
      %p161 = scmp.eq.s32.totalorder %s160, 0
      %s163 = sadd.s32 %s162, 1
      %s164 = scalar_select %p161, %s162, %s163
      %p167 = pneg %p161
      %p168 = scmp.eq.s32.totalorder %s16, 1
      %p169 = por %p167, %p168
      %p170 = scmp.ne.s32.totalorder %s162, %s165
      %p171 = scmp.eq.s32.totalorder %s16, 0
      %p172 = por %p170, %p171
      %p173 = scmp.ne.s32.totalorder %s162, %s165
      %p174 = scmp.eq.s32.totalorder %s21, 1
      %p175 = por %p173, %p174
      %p176 = scmp.ne.s32.totalorder %s165, %s166
      %p177 = scmp.eq.s32.totalorder %s21, 0
      %p178 = por %p176, %p177
      %p179 = scmp.ne.s32.totalorder %s165, %s166
      %p180 = scmp.eq.s32.totalorder %s22, 1
      %p181 = por %p179, %p180
      %p183 = scmp.ne.s32.totalorder %s166, %s182
      %p184 = scmp.eq.s32.totalorder %s22, 0
      %p185 = por %p183, %p184
      %p186 = scmp.le.s32.totalorder 1, %s16
      %p187 = scmp.lt.s32.totalorder %s16, 3
      %p188 = pnand %p186, %p187
      %p189 = pneg %p188
      // Predicated region
      $region9: #{tpu_custom_call.1} parent=5 // pred_check
        _
      $region10: #{tpu_custom_call.1} parent=5 // pred_check_branch
        %191 = sbr.rel (%p188) target = $region12
      $region11: #{tpu_custom_call.1} parent=5 // pred_region
        %s192 = ssub.s32 %s16, 1
        // Predicated region
        $region13: #{tpu_custom_call.1} parent=11 // pred_check
          %p193 = pneg %p89
        $region14: #{tpu_custom_call.1} parent=11 // pred_check_branch
          %195 = sbr.rel (%p193) target = $region16
        $region15: #{tpu_custom_call.1} parent=11 // pred_region
          _
        $region16: #{tpu_custom_call.1} parent=11 // pred_fallthru
          _
        // Predicated region
        $region17: #{tpu_custom_call.1} parent=11 // pred_check
          %p196 = pneg %p110
        $region18: #{tpu_custom_call.1} parent=11 // pred_check_branch
          %198 = sbr.rel (%p196) target = $region20
        $region19: #{tpu_custom_call.1} parent=11 // pred_region
          _
        $region20: #{tpu_custom_call.1} parent=11 // pred_fallthru
          _
        // Predicated region
        $region21: #{tpu_custom_call.1} parent=11 // pred_check
          %p199 = pneg %p131
        $region22: #{tpu_custom_call.1} parent=11 // pred_check_branch
          %201 = sbr.rel (%p199) target = $region24
        $region23: #{tpu_custom_call.1} parent=11 // pred_region
          %s203 = ssub.s32 1024, 1024
          %204 = vsyncadd [#allocation3], %s203
          %s205 = sshll.u32 [#allocation2], 4
          %s206 = int_to_ptr.vmem [resolvable:$true] %s205
          %211 = dma.hbm_to_vmem [thread:$0]  %s4, 1024, %s206, [#allocation3], 64, 64, 4
        $region24: #{tpu_custom_call.1} parent=11 // pred_fallthru
          _
        // Predicated region
        $region25: #{tpu_custom_call.1} parent=11 // pred_check
          %p212 = pneg %p152
        $region26: #{tpu_custom_call.1} parent=11 // pred_check_branch
          %214 = sbr.rel (%p212) target = $region28
        $region27: #{tpu_custom_call.1} parent=11 // pred_region
          _
        $region28: #{tpu_custom_call.1} parent=11 // pred_fallthru
          _
      $region12: #{tpu_custom_call.1} parent=5 // pred_fallthru
        _
      %p215 = scmp.lt.s32.totalorder %s16, 2
      // Predicated region
      $region29: #{tpu_custom_call.1} parent=5 // pred_check
        %p216 = pneg %p215
      $region30: #{tpu_custom_call.1} parent=5 // pred_check_branch
        %218 = sbr.rel (%p216) target = $region32
      $region31: #{tpu_custom_call.1} parent=5 // pred_region
        // Predicated region
        $region33: #{tpu_custom_call.1} parent=31 // pred_check
          %p219 = pneg %p36
        $region34: #{tpu_custom_call.1} parent=31 // pred_check_branch
          %221 = sbr.rel (%p219) target = $region36
        $region35: #{tpu_custom_call.1} parent=31 // pred_region
          %s222 = smul.u32 2, %s16
          %p223 = scmp.lt.s32.totalorder %s222, 3
          %s224 = scalar_select %p223, %s222, 3
          %s225 = smul.addr %s224, 2
          %s226 = smul.addr %s225, 4
          %s227 = scalar_lea.vmem %s0, %s226
          %s228 = smul.u32 2, %s16
        $region36: #{tpu_custom_call.1} parent=31 // pred_fallthru
          _
        // Predicated region
        $region37: #{tpu_custom_call.1} parent=31 // pred_check
          %p229 = pneg %p62
        $region38: #{tpu_custom_call.1} parent=31 // pred_check_branch
          %231 = sbr.rel (%p229) target = $region40
        $region39: #{tpu_custom_call.1} parent=31 // pred_region
          %s232 = smul.u32 2, %s16
          %p233 = scmp.lt.s32.totalorder %s232, 3
          %s234 = scalar_select %p233, %s232, 3
          %s235 = smul.addr %s234, 2
          %s236 = smul.addr %s235, 4
          %s237 = scalar_lea.vmem %s1, %s236
          %s238 = smul.u32 2, %s16
        $region40: #{tpu_custom_call.1} parent=31 // pred_fallthru
          _
      $region32: #{tpu_custom_call.1} parent=5 // pred_fallthru
        _
      %p239 = scmp.le.s32.totalorder 1, %s16
      %p240 = scmp.lt.s32.totalorder %s16, 3
      %p241 = pnand %p239, %p240
      %p242 = pneg %p241
      // Predicated region
      $region41: #{tpu_custom_call.1} parent=5 // pred_check
        _
      $region42: #{tpu_custom_call.1} parent=5 // pred_check_branch
        %244 = sbr.rel (%p241) target = $region44
      $region43: #{tpu_custom_call.1} parent=5 // pred_region
        %s245 = ssub.s32 %s16, 1
        // Predicated region
        $region45: #{tpu_custom_call.1} parent=43 // pred_check
          %p246 = pneg %p131
        $region46: #{tpu_custom_call.1} parent=43 // pred_check_branch
          %248 = sbr.rel (%p246) target = $region48
        $region47: #{tpu_custom_call.1} parent=43 // pred_region
          %249 = dma.done [#allocation3], 1024
        $region48: #{tpu_custom_call.1} parent=43 // pred_fallthru
          _
        %s250 = smul.u32 2, %s21
        %p251 = scmp.lt.s32.totalorder %s250, 3
        %s252 = scalar_select %p251, %s250, 3
        %s253 = smul.addr %s252, 2
        %s254 = smul.addr %s253, 4
        %s255 = scalar_lea.vmem %s0, %s254
        %p256 = pneg %p42
        %p257 = pneg %p39
        %s258 = smul.u32 2, %s21
        %p259 = scmp.lt.s32.totalorder %s258, 3
        %s260 = scalar_select %p259, %s258, 3
        %s261 = smul.addr %s260, 2
        %s262 = smul.addr %s261, 4
        %s263 = scalar_lea.vmem %s1, %s262
        %p264 = pneg %p68
        %p265 = pneg %p65
        %p266 = pneg %p89
        %p267 = pneg %p86
        %p268 = pneg %p110
        %p269 = pneg %p107
        %p270 = pneg %p131
        %p271 = pneg %p128
        %p272 = pneg %p152
        %p273 = pneg %p149
        %p274 = pneg %p178
        %p275 = pneg %p175
        %s276 = sand.u32 %s165, 1
        %s277 = scalar_lea.sflag [#allocation4], %s276
        %s278 = sand.u32 %s165, 1
        %s279 = smul.addr %s278, 16
        %s280 = scalar_lea.vmem [#allocation5], %s279
        %s281 = smul.u32 2, %s21
        %p282 = scmp.lt.s32.totalorder %s281, 3
        %s283 = scalar_select %p282, %s281, 3
        %s284 = smul.addr %s283, 2
        %s285 = smul.addr %s284, 4
        %s286 = scalar_lea.vmem %s0, %s285
        %s287 = smul.u32 2, %s21
        %s288 = smul.u32 2, %s21
        %p289 = scmp.lt.s32.totalorder %s288, 3
        %s290 = scalar_select %p289, %s288, 3
        %s291 = smul.addr %s290, 2
        %s292 = smul.addr %s291, 4
        %s293 = scalar_lea.vmem %s1, %s292
        %s294 = smul.u32 2, %s21
        %s295 = smul.u32 2, %s21
        %v297 = vld [vmem:[%s286] sm:$0xf]
        %v298 = vld [vmem:[%s286 + $0x4] sm:$0xf]
        %v299 = vld [vmem:[%s286 + $0x8] sm:$0xf]
        %v300 = vld [vmem:[%s286 + $0xc] sm:$0xf]
        %v301 = vld [vmem:[%s293] sm:$0xf]
        %v302 = vld [vmem:[%s293 + $0x4] sm:$0xf]
        %v303 = vld [vmem:[%s293 + $0x8] sm:$0xf]
        %v304 = vld [vmem:[%s293 + $0xc] sm:$0xf]
        %v307 = vunpack.c.l.b16 %v297
        %v308 = vunpack.c.l.b16 %v298
        %v309 = vpack.c.b16 %v308, %v307
        %v312 = vunpack.c.l.b16 %v301
        %v313 = vunpack.c.l.b16 %v302
        %v314 = vpack.c.b16 %v313, %v312
        %vm316 = vcmask 130048
        %v318 = vsel %vm316, %v309, 0
        %320 = vmatprep.subr.bf16.mxu0 0
        %321 = vmatpush1.bf16.msra.mxu0 %v314
        %322 = vmatprep.subr.bf16.mxu0 0
        %323 = vmatpush1.bf16.msra.mxu0 0
        %324 = vmatprep.subr.bf16.mxu0 0
        %325 = vmatpush1.bf16.msra.mxu0 0
        %326 = vmatprep.subr.bf16.mxu0 0
        %327 = vmatpush1.bf16.msra.mxu0 0
        %328 = vmatprep.subr.bf16.mxu0 0
        %329 = vmatpush1.bf16.msra.mxu0 0
        %330 = vmatprep.subr.bf16.mxu0 0
        %331 = vmatpush1.bf16.msra.mxu0 0
        %332 = vmatprep.subr.bf16.mxu0 0
        %333 = vmatpush1.bf16.msra.mxu0 0
        %334 = vmatprep.subr.bf16.mxu0 0
        %335 = vmatpush1.bf16.msra.mxu0 0
        %336 = vmatprep.subr.bf16.mxu0 0
        %337 = vmatpush1.bf16.msra.mxu0 0
        %338 = vmatprep.subr.bf16.mxu0 0
        %339 = vmatpush1.bf16.msra.mxu0 0
        %340 = vmatprep.subr.bf16.mxu0 0
        %341 = vmatpush1.bf16.msra.mxu0 0
        %342 = vmatprep.subr.bf16.mxu0 0
        %343 = vmatpush1.bf16.msra.mxu0 0
        %344 = vmatprep.subr.bf16.mxu0 0
        %345 = vmatpush1.bf16.msra.mxu0 0
        %346 = vmatprep.subr.bf16.mxu0 0
        %347 = vmatpush1.bf16.msra.mxu0 0
        %348 = vmatprep.subr.bf16.mxu0 0
        %349 = vmatpush1.bf16.msra.mxu0 0
        %350 = vmatprep.subr.bf16.mxu0 0
        %351 = vmatpush1.bf16.msra.mxu0 0
        %352 = vmatprep.mubr.bf16.mxu0 0
        %353 = vmatmul.mubr.bf16.gmra.mrb[0].mxu0 %v318
        %v354 = vpop.f32.mrb[0].mxu0
        %v355 = vadd.f32 0.0, %v354
        %v356 = vpop.f32.mrb[0].mxu0
        %v357 = vpop.f32.mrb[0].mxu0
        %v358 = vadd.f32 0.0, %v357
        %v359 = vpop.f32.mrb[0].mxu0
        %360 = vdwg.mxu0
        %v363 = vunpack.c.l.b16 %v299
        %v364 = vunpack.c.l.b16 %v300
        %v365 = vpack.c.b16 %v364, %v363
        %v368 = vunpack.c.l.b16 %v303
        %v369 = vunpack.c.l.b16 %v304
        %v370 = vpack.c.b16 %v369, %v368
        %v373 = vsel %vm316, %v365, 0
        %375 = vmatprep.subr.bf16.mxu0 0
        %376 = vmatpush1.bf16.msra.mxu0 %v370
        %377 = vmatprep.subr.bf16.mxu0 0
        %378 = vmatpush1.bf16.msra.mxu0 0
        %379 = vmatprep.subr.bf16.mxu0 0
        %380 = vmatpush1.bf16.msra.mxu0 0
        %381 = vmatprep.subr.bf16.mxu0 0
        %382 = vmatpush1.bf16.msra.mxu0 0
        %383 = vmatprep.subr.bf16.mxu0 0
        %384 = vmatpush1.bf16.msra.mxu0 0
        %385 = vmatprep.subr.bf16.mxu0 0
        %386 = vmatpush1.bf16.msra.mxu0 0
        %387 = vmatprep.subr.bf16.mxu0 0
        %388 = vmatpush1.bf16.msra.mxu0 0
        %389 = vmatprep.subr.bf16.mxu0 0
        %390 = vmatpush1.bf16.msra.mxu0 0
        %391 = vmatprep.subr.bf16.mxu0 0
        %392 = vmatpush1.bf16.msra.mxu0 0
        %393 = vmatprep.subr.bf16.mxu0 0
        %394 = vmatpush1.bf16.msra.mxu0 0
        %395 = vmatprep.subr.bf16.mxu0 0
        %396 = vmatpush1.bf16.msra.mxu0 0
        %397 = vmatprep.subr.bf16.mxu0 0
        %398 = vmatpush1.bf16.msra.mxu0 0
        %399 = vmatprep.subr.bf16.mxu0 0
        %400 = vmatpush1.bf16.msra.mxu0 0
        %401 = vmatprep.subr.bf16.mxu0 0
        %402 = vmatpush1.bf16.msra.mxu0 0
        %403 = vmatprep.subr.bf16.mxu0 0
        %404 = vmatpush1.bf16.msra.mxu0 0
        %405 = vmatprep.subr.bf16.mxu0 0
        %406 = vmatpush1.bf16.msra.mxu0 0
        %407 = vmatprep.mubr.bf16.mxu0 0
        %408 = vmatmul.mubr.bf16.gmra.mrb[0].mxu0 %v373
        %v409 = vpop.f32.mrb[0].mxu0
        %v410 = vadd.f32 0.0, %v409
        %v411 = vpop.f32.mrb[0].mxu0
        %v412 = vpop.f32.mrb[0].mxu0
        %v413 = vadd.f32 0.0, %v412
        %v414 = vpop.f32.mrb[0].mxu0
        %415 = vdwg.mxu0
        %v416 = vpack.c.bf16 %v358, %v355
        %v417 = vpack.c.bf16 %v413, %v410
        %v418 = vld [vmem:[%s2] sm:$0xf]
        %v419 = vld [vmem:[%s3] sm:$0x1]
        %v421 = vlaneseq
        %v422 = vshrl.u32 %v421, 7
        %v423 = vsub.s32 0, %v422
        %v424 = vrot.slane %v419, %v423
        %vm426 = vcmask 64512
        %v428 = vsel %vm426, %v416, 0
        %v431 = vsel %vm426, %v417, 0
        %vm433 = vcmask 1043456
        %v435 = vsel %vm433, %v418, 0
        %437 = vmatprep.subr.bf16.mxu0 0
        %438 = vmatpush1.bf16.msra.mxu0 %v435
        %439 = vmatprep.subr.bf16.mxu0 0
        %440 = vmatpush1.bf16.msra.mxu0 0
        %441 = vmatprep.subr.bf16.mxu0 0
        %442 = vmatpush1.bf16.msra.mxu0 0
        %443 = vmatprep.subr.bf16.mxu0 0
        %444 = vmatpush1.bf16.msra.mxu0 0
        %445 = vmatprep.subr.bf16.mxu0 0
        %446 = vmatpush1.bf16.msra.mxu0 0
        %447 = vmatprep.subr.bf16.mxu0 0
        %448 = vmatpush1.bf16.msra.mxu0 0
        %449 = vmatprep.subr.bf16.mxu0 0
        %450 = vmatpush1.bf16.msra.mxu0 0
        %451 = vmatprep.subr.bf16.mxu0 0
        %452 = vmatpush1.bf16.msra.mxu0 0
        %453 = vmatprep.subr.bf16.mxu0 0
        %454 = vmatpush1.bf16.msra.mxu0 0
        %455 = vmatprep.subr.bf16.mxu0 0
        %456 = vmatpush1.bf16.msra.mxu0 0
        %457 = vmatprep.subr.bf16.mxu0 0
        %458 = vmatpush1.bf16.msra.mxu0 0
        %459 = vmatprep.subr.bf16.mxu0 0
        %460 = vmatpush1.bf16.msra.mxu0 0
        %461 = vmatprep.subr.bf16.mxu0 0
        %462 = vmatpush1.bf16.msra.mxu0 0
        %463 = vmatprep.subr.bf16.mxu0 0
        %464 = vmatpush1.bf16.msra.mxu0 0
        %465 = vmatprep.subr.bf16.mxu0 0
        %466 = vmatpush1.bf16.msra.mxu0 0
        %467 = vmatprep.subr.bf16.mxu0 0
        %468 = vmatpush1.bf16.msra.mxu0 0
        %469 = vmatprep.mubr.bf16.mxu0 0
        %470 = vmatmul.mubr.bf16.gmra.mrb[0].mxu0 %v428
        %v471 = vpop.f32.mrb[0].mxu0
        %v472 = vadd.f32 %v424, %v471
        %v473 = vpop.f32.mrb[0].mxu0
        %v474 = vpop.f32.mrb[0].mxu0
        %v475 = vadd.f32 %v424, %v474
        %v476 = vpop.f32.mrb[0].mxu0
        %477 = vmatprep.mubr.bf16.mxu0 0
        %478 = vmatmul.mubr.bf16.gmra.mrb[0].mxu0 %v431
        %v479 = vpop.f32.mrb[0].mxu0
        %v480 = vadd.f32 %v424, %v479
        %v481 = vpop.f32.mrb[0].mxu0
        %v482 = vpop.f32.mrb[0].mxu0
        %v483 = vadd.f32 %v424, %v482
        %v484 = vpop.f32.mrb[0].mxu0
        %485 = vdwg.mxu0
        %v486 = vmax.f32 %v472, 0.0
        %v487 = vmax.f32 %v475, 0.0
        %v488 = vmax.f32 %v480, 0.0
        %v489 = vmax.f32 %v483, 0.0
        %v490 = vpack.c.bf16 %v487, %v486
        %v491 = vpack.c.bf16 %v489, %v488
        %492 = vmatprep.subr.bf16.mxu0 0
        %493 = vmatpush1.bf16.msra.mxu0 %v490
        %494 = vmatprep.subr.bf16.mxu0 0
        %495 = vmatpush1.bf16.msra.mxu0 0
        %496 = vmatprep.subr.bf16.mxu0 0
        %497 = vmatpush1.bf16.msra.mxu0 0
        %498 = vmatprep.subr.bf16.mxu0 0
        %499 = vmatpush1.bf16.msra.mxu0 0
        %500 = vmatprep.subr.bf16.mxu0 0
        %501 = vmatpush1.bf16.msra.mxu0 0
        %502 = vmatprep.subr.bf16.mxu0 0
        %503 = vmatpush1.bf16.msra.mxu0 0
        %504 = vmatprep.subr.bf16.mxu0 0
        %505 = vmatpush1.bf16.msra.mxu0 0
        %506 = vmatprep.subr.bf16.mxu0 0
        %507 = vmatpush1.bf16.msra.mxu0 0
        %508 = vmatprep.subr.bf16.mxu0 0
        %509 = vmatpush1.bf16.msra.mxu0 0
        %510 = vmatprep.subr.bf16.mxu0 0
        %511 = vmatpush1.bf16.msra.mxu0 0
        %512 = vmatprep.subr.bf16.mxu0 0
        %513 = vmatpush1.bf16.msra.mxu0 0
        %514 = vmatprep.subr.bf16.mxu0 0
        %515 = vmatpush1.bf16.msra.mxu0 0
        %516 = vmatprep.subr.bf16.mxu0 0
        %517 = vmatpush1.bf16.msra.mxu0 0
        %518 = vmatprep.subr.bf16.mxu0 0
        %519 = vmatpush1.bf16.msra.mxu0 0
        %520 = vmatprep.subr.bf16.mxu0 0
        %521 = vmatpush1.bf16.msra.mxu0 0
        %522 = vmatprep.subr.bf16.mxu0 0
        %523 = vmatpush1.bf16.msra.mxu0 0
        %524 = vmatprep.mubr.bf16.mxu0 0
        %525 = vmatmul.mubr.bf16.gmra.mrb[0].mxu0 %v318
        %v526 = vpop.f32.mrb[0].mxu0
        %v527 = vadd.f32 0.0, %v526
        %v528 = vpop.f32.mrb[0].mxu0
        %v529 = vpop.f32.mrb[0].mxu0
        %v530 = vadd.f32 0.0, %v529
        %v531 = vpop.f32.mrb[0].mxu0
        %532 = vdwg.mxu0
        %533 = vmatprep.subr.bf16.mxu0 0
        %534 = vmatpush1.bf16.msra.mxu0 %v491
        %535 = vmatprep.subr.bf16.mxu0 0
        %536 = vmatpush1.bf16.msra.mxu0 0
        %537 = vmatprep.subr.bf16.mxu0 0
        %538 = vmatpush1.bf16.msra.mxu0 0
        %539 = vmatprep.subr.bf16.mxu0 0
        %540 = vmatpush1.bf16.msra.mxu0 0
        %541 = vmatprep.subr.bf16.mxu0 0
        %542 = vmatpush1.bf16.msra.mxu0 0
        %543 = vmatprep.subr.bf16.mxu0 0
        %544 = vmatpush1.bf16.msra.mxu0 0
        %545 = vmatprep.subr.bf16.mxu0 0
        %546 = vmatpush1.bf16.msra.mxu0 0
        %547 = vmatprep.subr.bf16.mxu0 0
        %548 = vmatpush1.bf16.msra.mxu0 0
        %549 = vmatprep.subr.bf16.mxu0 0
        %550 = vmatpush1.bf16.msra.mxu0 0
        %551 = vmatprep.subr.bf16.mxu0 0
        %552 = vmatpush1.bf16.msra.mxu0 0
        %553 = vmatprep.subr.bf16.mxu0 0
        %554 = vmatpush1.bf16.msra.mxu0 0
        %555 = vmatprep.subr.bf16.mxu0 0
        %556 = vmatpush1.bf16.msra.mxu0 0
        %557 = vmatprep.subr.bf16.mxu0 0
        %558 = vmatpush1.bf16.msra.mxu0 0
        %559 = vmatprep.subr.bf16.mxu0 0
        %560 = vmatpush1.bf16.msra.mxu0 0
        %561 = vmatprep.subr.bf16.mxu0 0
        %562 = vmatpush1.bf16.msra.mxu0 0
        %563 = vmatprep.subr.bf16.mxu0 0
        %564 = vmatpush1.bf16.msra.mxu0 0
        %565 = vmatprep.mubr.bf16.mxu0 0
        %566 = vmatmul.mubr.bf16.gmra.mrb[0].mxu0 %v373
        %v567 = vpop.f32.mrb[0].mxu0
        %v568 = vadd.f32 0.0, %v567
        %v569 = vpop.f32.mrb[0].mxu0
        %v570 = vpop.f32.mrb[0].mxu0
        %v571 = vadd.f32 0.0, %v570
        %v572 = vpop.f32.mrb[0].mxu0
        %573 = vdwg.mxu0
        %v574 = vpack.c.bf16 %v530, %v527
        %v575 = vpack.c.bf16 %v571, %v568
        %v576 = vld [vmem:[#allocation2] sm:$0xf]
        %v577 = vld [vmem:[#allocation2 + $0x4] sm:$0xf]
        %v578 = vld [vmem:[#allocation2 + $0x8] sm:$0xf]
        %v579 = vld [vmem:[#allocation2 + $0xc] sm:$0xf]
        %v580 = vld [vmem:[#allocation2 + $0x10] sm:$0xf]
        %v581 = vld [vmem:[#allocation2 + $0x14] sm:$0xf]
        %v582 = vld [vmem:[#allocation2 + $0x18] sm:$0xf]
        %v583 = vld [vmem:[#allocation2 + $0x1c] sm:$0xf]
        %v584 = vld [vmem:[#allocation2 + $0x20] sm:$0xf]
        %v585 = vld [vmem:[#allocation2 + $0x24] sm:$0xf]
        %v586 = vld [vmem:[#allocation2 + $0x28] sm:$0xf]
        %v587 = vld [vmem:[#allocation2 + $0x2c] sm:$0xf]
        %v588 = vld [vmem:[#allocation2 + $0x30] sm:$0xf]
        %v589 = vld [vmem:[#allocation2 + $0x34] sm:$0xf]
        %v590 = vld [vmem:[#allocation2 + $0x38] sm:$0xf]
        %v591 = vld [vmem:[#allocation2 + $0x3c] sm:$0xf]
        %v592 = vld [vmem:[%s5] sm:$0x1]
        %v594 = vlaneseq
        %v595 = vshrl.u32 %v594, 7
        %v596 = vsub.s32 0, %v595
        %v597 = vrot.slane %v592, %v596
        %v615 = vunpack.c.l.b16 %v576
        %v616 = vunpack.c.l.b16 %v577
        %v617 = vunpack.c.l.b16 %v578
        %v618 = vunpack.c.l.b16 %v579
        %v619 = vunpack.c.l.b16 %v580
        %v620 = vunpack.c.l.b16 %v581
        %v621 = vunpack.c.l.b16 %v582
        %v622 = vunpack.c.l.b16 %v583
        %v623 = vunpack.c.l.b16 %v584
        %v624 = vunpack.c.l.b16 %v585
        %v625 = vunpack.c.l.b16 %v586
        %v626 = vunpack.c.l.b16 %v587
        %v627 = vunpack.c.l.b16 %v588
        %v628 = vunpack.c.l.b16 %v589
        %v629 = vunpack.c.l.b16 %v590
        %v630 = vunpack.c.l.b16 %v591
        %v631 = vpack.c.b16 %v616, %v615
        %v632 = vpack.c.b16 %v618, %v617
        %v633 = vpack.c.b16 %v620, %v619
        %v634 = vpack.c.b16 %v622, %v621
        %v635 = vpack.c.b16 %v624, %v623
        %v636 = vpack.c.b16 %v626, %v625
        %v637 = vpack.c.b16 %v628, %v627
        %v638 = vpack.c.b16 %v630, %v629
        %647 = vmatprep.subr.bf16.mxu0 0
        %648 = vmatpush1.bf16.msra.mxu0 %v631
        %649 = vmatprep.subr.bf16.mxu0 0
        %650 = vmatpush1.bf16.msra.mxu0 %v632
        %651 = vmatprep.subr.bf16.mxu0 0
        %652 = vmatpush1.bf16.msra.mxu0 %v633
        %653 = vmatprep.subr.bf16.mxu0 0
        %654 = vmatpush1.bf16.msra.mxu0 %v634
        %655 = vmatprep.subr.bf16.mxu0 0
        %656 = vmatpush1.bf16.msra.mxu0 %v635
        %657 = vmatprep.subr.bf16.mxu0 0
        %658 = vmatpush1.bf16.msra.mxu0 %v636
        %659 = vmatprep.subr.bf16.mxu0 0
        %660 = vmatpush1.bf16.msra.mxu0 %v637
        %661 = vmatprep.subr.bf16.mxu0 0
        %662 = vmatpush1.bf16.msra.mxu0 %v638
        %663 = vmatprep.subr.bf16.mxu0 0
        %664 = vmatpush1.bf16.msra.mxu0 0
        %665 = vmatprep.subr.bf16.mxu0 0
        %666 = vmatpush1.bf16.msra.mxu0 0
        %667 = vmatprep.subr.bf16.mxu0 0
        %668 = vmatpush1.bf16.msra.mxu0 0
        %669 = vmatprep.subr.bf16.mxu0 0
        %670 = vmatpush1.bf16.msra.mxu0 0
        %671 = vmatprep.subr.bf16.mxu0 0
        %672 = vmatpush1.bf16.msra.mxu0 0
        %673 = vmatprep.subr.bf16.mxu0 0
        %674 = vmatpush1.bf16.msra.mxu0 0
        %675 = vmatprep.subr.bf16.mxu0 0
        %676 = vmatpush1.bf16.msra.mxu0 0
        %677 = vmatprep.subr.bf16.mxu0 0
        %678 = vmatpush1.bf16.msra.mxu0 0
        %679 = vmatprep.mubr.bf16.mxu0 0
        %680 = vmatmul.mubr.bf16.gmra.mrb[0].mxu0 %v574
        %v681 = vpop.f32.mrb[0].mxu0
        %v682 = vadd.f32 %v597, %v681
        %v683 = vpop.f32.mrb[0].mxu0
        %v684 = vpop.f32.mrb[0].mxu0
        %v685 = vadd.f32 %v597, %v684
        %v686 = vpop.f32.mrb[0].mxu0
        %687 = vmatprep.mubr.bf16.mxu0 0
        %688 = vmatmul.mubr.bf16.gmra.mrb[0].mxu0 %v575
        %v689 = vpop.f32.mrb[0].mxu0
        %v690 = vadd.f32 %v597, %v689
        %v691 = vpop.f32.mrb[0].mxu0
        %v692 = vpop.f32.mrb[0].mxu0
        %v693 = vadd.f32 %v597, %v692
        %v694 = vpop.f32.mrb[0].mxu0
        %695 = vdwg.mxu0
        %v696 = vpack.c.bf16 %v685, %v682
        %v697 = vpack.c.bf16 %v693, %v690
        %v700 = vunpack.c.l.b16 %v696
        %v701 = vunpack.c.h.b16 %v696
        %v702 = vunpack.c.l.b16 %v697
        %v703 = vunpack.c.h.b16 %v697
        %v704 = vpack.c.b16 %v700, %v700
        %v705 = vpack.c.b16 %v701, %v701
        %v706 = vpack.c.b16 %v702, %v702
        %v707 = vpack.c.b16 %v703, %v703
        %712 = vst [vmem:[%s280] sm:$0xf] %v704
        %713 = vst [vmem:[%s280 + $0x4] sm:$0xf] %v705
        %714 = vst [vmem:[%s280 + $0x8] sm:$0xf] %v706
        %715 = vst [vmem:[%s280 + $0xc] sm:$0xf] %v707
        %s716 = sand.u32 %s165, 1
        %s717 = scalar_lea.sflag [#allocation4], %s716
        %s718 = sand.u32 %s165, 1
        %s719 = smul.addr %s718, 16
        %s720 = scalar_lea.vmem [#allocation5], %s719
        // Predicated region
        $region49: #{tpu_custom_call.1} parent=43 // pred_check
          %p721 = pneg %p175
        $region50: #{tpu_custom_call.1} parent=43 // pred_check_branch
          %723 = sbr.rel (%p721) target = $region52
        $region51: #{tpu_custom_call.1} parent=43 // pred_region
          %s724 = smul.u32 2, %s21
          %s726 = ssub.s32 256, 256
          %727 = vsyncadd %s717, %s726
          %s728 = smul.addr %s724, 2
          %s729 = smul.addr %s728, 64
          %s730 = scalar_lea.hbm %s6, %s729
          %s731 = sshll.u32 %s720, 4
          %s732 = int_to_ptr.vmem [resolvable:$true] %s731
          %737 = dma.vmem_to_hbm [thread:$0]  %s732, 256, %s730, %s717, 64, 64, 4
        $region52: #{tpu_custom_call.1} parent=43 // pred_fallthru
          _
      $region44: #{tpu_custom_call.1} parent=5 // pred_fallthru
        _
      %p738 = scmp.le.s32.totalorder 2, %s16
      // Predicated region
      $region53: #{tpu_custom_call.1} parent=5 // pred_check
        %p739 = pneg %p738
      $region54: #{tpu_custom_call.1} parent=5 // pred_check_branch
        %741 = sbr.rel (%p739) target = $region56
      $region55: #{tpu_custom_call.1} parent=5 // pred_region
        %s742 = ssub.s32 %s16, 2
        // Predicated region
        $region57: #{tpu_custom_call.1} parent=55 // pred_check
          %p743 = pneg %p181
        $region58: #{tpu_custom_call.1} parent=55 // pred_check_branch
          %745 = sbr.rel (%p743) target = $region60
        $region59: #{tpu_custom_call.1} parent=55 // pred_region
          %s746 = sand.u32 %s166, 1
          %s747 = scalar_lea.sflag [#allocation4], %s746
          %s748 = sand.u32 %s166, 1
          %s749 = smul.addr %s748, 16
          %s750 = scalar_lea.vmem [#allocation5], %s749
          %751 = dma.done %s747, 256
        $region60: #{tpu_custom_call.1} parent=55 // pred_fallthru
          _
      $region56: #{tpu_custom_call.1} parent=5 // pred_fallthru
        _
    $region6: #{tpu_custom_call.1} parent=1 // loop_footer
      %s20 = sadd.s32 1, %s16
    $region7: #{tpu_custom_call.1} parent=1 // loop_footer_branch
      %15 = sbr.rel target = $region3
    $region8: #{tpu_custom_call.1} parent=1 // loop_exit
      _
    %752 = vsyncpa [#allocation3], 1
    %s753 = scalar_lea.sflag [#allocation3], 1
    %754 = vsyncpa %s753, 1
    %755 = vsyncpa [#allocation4], 1
    %s756 = scalar_lea.sflag [#allocation4], 1
    %757 = vsyncpa %s756, 1

</llo_original>
